<compile_context>
chip_gen: v5e
topology: v5e:2x2
jax: 0.10.0
libtpu: 0.0.40
codegen_flags: <defaults>
</compile_context>

<pallas_src>
import functools

import jax
import jax.numpy as jnp
from jax import lax
from jax.experimental import pallas as pl
from jax.experimental.pallas import tpu as pltpu

_NEG_BIG = -1e30
_POS_BIG = 1e30


def _semantic_batch_hard_kernel(x_ref, wv_ref, w_ref, b_ref, alpha_ref,
                                xt_ref, xnorm_ref, lab_col_ref, lab_row_ref,
                                diff_ref, sem_ref,
                                sem_sc, sem_norm_sc, fp_sc, cn_sc,
                                *, tile_rows, tile_cols, eps_total):
    k = pl.program_id(1)

    # ---- per-row-tile init: semantic embedding + accumulator reset -----------
    @pl.when(k == 0)
    def _init():
        x = x_ref[...]            # (TM, H)
        alpha = alpha_ref[...]    # (TM, 1)
        sem_org = jnp.dot(wv_ref[...], w_ref[...],
                          preferred_element_type=jnp.float32) + b_ref[...]
        sem = alpha * sem_org + (1.0 - alpha) * x
        sem_sc[...] = sem
        sem_ref[...] = sem
        sem_norm_sc[...] = jnp.sum(sem * sem, axis=1, keepdims=True)
        fp_sc[...] = jnp.full(fp_sc.shape, _NEG_BIG, dtype=fp_sc.dtype)
        cn_sc[...] = jnp.full(cn_sc.shape, _POS_BIG, dtype=cn_sc.dtype)

    # ---- online batch-hard mining over this column tile -----------------------
    sem = sem_sc[...]             # (TM, H)
    # xt is pre-scaled by -2 in the wrapper, so
    #   score_ij = ||x_j||^2 - 2 <sem_i, x_j>  and  dist_sq_ij = ||sem_i||^2 + score_ij.
    # The per-row ||sem_i||^2 / clamp / eps do not change which column wins, so
    # they are deferred to the finalize step below.
    score = jnp.dot(sem, xt_ref[...],
                    preferred_element_type=jnp.float32) + xnorm_ref[...]   # (TM, TN)

    same = lab_col_ref[...] == lab_row_ref[...]                            # (TM, TN)

    tm, tn = score.shape
    # Diagonal mask with a single (TM,TN) iota: global row index minus the
    # column-tile offset lives on a (TM,1) column.
    row_shift = pl.program_id(0) * tile_rows - k * tile_cols
    row_ids = lax.broadcasted_iota(jnp.int32, (tm, 1), 0) + row_shift      # (TM, 1)
    cols = lax.broadcasted_iota(jnp.int32, (tm, tn), 1)                    # (TM, TN)
    positive_mask = jnp.logical_xor(same, cols == row_ids)

    fp_sc[...] = jnp.maximum(
        fp_sc[...],
        jnp.max(jnp.where(positive_mask, score, _NEG_BIG), axis=1, keepdims=True))
    cn_sc[...] = jnp.minimum(
        cn_sc[...],
        jnp.min(jnp.where(same, _POS_BIG, score), axis=1, keepdims=True))

    # ---- finalize: restore the deferred terms, sqrt, softplus -----------------
    @pl.when(k == pl.num_programs(1) - 1)
    def _finalize():
        sem_norm = sem_norm_sc[...]
        # clamp tiny negative values from cancellation; eps_total = H * 1e-16
        # matches torch's (diffs**2 + 1e-16).sum(-1).
        fp_sq = jnp.maximum(sem_norm + fp_sc[...], 0.0) + eps_total
        cn_sq = jnp.maximum(sem_norm + cn_sc[...], 0.0) + eps_total
        d = jnp.sqrt(fp_sq) - jnp.sqrt(cn_sq)
        # softplus (beta=1, threshold=20), matching torch.nn.functional.softplus
        diff_ref[...] = jnp.where(d > 20.0, d, jnp.log1p(jnp.exp(d)))


def _round_up(v, m):
    return ((v + m - 1) // m) * m


def _vmem_estimate(tm, tn, h, wv_dim):
    """Generous per-step VMEM residency estimate (bytes)."""
    f = 4
    live = 8 * tm * tn * f                                   # (TM,TN) temporaries
    col_io = 2 * (h * tn + 2 * tn) * f                       # xt / xnorm / lab_row (dbl buf)
    row_io = 2 * (2 * tm * h + tm * wv_dim + 3 * tm) * f     # x, sem, wv, alpha, lab, diff
    resident = 2 * (wv_dim * h + h) * f                      # fc weight + bias
    scratch = (tm * h + 3 * tm) * f
    return live + col_io + row_io + resident + scratch


def semantic_batch_hard_xbm_forward(x, wv, label, fc_w_t, fc_b, alpha,
                                    *, max_tile_rows=256, max_tile_cols=2048):
    """x:(N,H) wv:(N,Wv) label:(N,) fc_w_t:(Wv,H) fc_b:(H,) alpha:(N,1)."""
    n, h = x.shape
    wv_dim = wv.shape[1]

    x = x.astype(jnp.float32)
    wv = wv.astype(jnp.float32)
    alpha = alpha.astype(jnp.float32)
    label = label.astype(jnp.int32)

    # ---- column-side (x side of the distance matrix) tiling -------------------
    if n <= max_tile_cols:
        tn = n
        n_cols = n
    else:
        kc = pl.cdiv(n, max_tile_cols)
        tn = _round_up(pl.cdiv(n, kc), 128)
        n_cols = kc * tn
    col_pad = n_cols - n

    # ---- row-side tiling, sized from the actual VMEM capacity -----------------
    try:
        vmem_cap = int(pltpu.get_tpu_info().vmem_capacity_bytes)
    except Exception:  # pragma: no cover - conservative fallback (v7x-sized)
        vmem_cap = 64 * 1024 * 1024
    budget = max(min(vmem_cap - (16 << 20), 96 << 20), 24 << 20)

    tm = 8
    for cand in (max_tile_rows, 128, 64, 32, 16, 8):
        if cand <= 0:
            continue
        cand8 = _round_up(min(cand, max(n, 1)), 8)
        if _vmem_estimate(cand8, tn, h, wv_dim) <= budget:
            tm = cand8
            break
    # Ensure >=2 row tiles for batches that otherwise fit in one tile, so both
    # v7x TensorCores get work from the "parallel" row axis (negligible cost on
    # single-core chips).
    if n >= 16 and _round_up(n, tm) // tm == 1:
        tm = _round_up(pl.cdiv(n, 2), 8)
    n_rows = _round_up(n, tm)
    row_pad = n_rows - n

    # ---- build padded operands -------------------------------------------------
    def pad_rows(a, value=0):
        if row_pad == 0:
            return a
        return jnp.pad(a, ((0, row_pad), (0, 0)), constant_values=value)

    x_p = pad_rows(x)
    wv_p = pad_rows(wv)
    alpha_p = pad_rows(alpha)
    lab_col = pad_rows(label.reshape(n, 1), value=-1)

    # Column-side operands: fold the Gram identity's -2 into x^T so the kernel's
    # matmul output needs no per-element scale.  Padded columns get a huge norm
    # and a sentinel label so they can never win either mining reduction.
    xt = -2.0 * x.T                                   # (H, N)
    x_norm = jnp.sum(x * x, axis=1)[None, :]          # (1, N)
    lab_row = label.reshape(1, n)
    if col_pad:
        xt = jnp.pad(xt, ((0, 0), (0, col_pad)))
        x_norm = jnp.pad(x_norm, ((0, 0), (0, col_pad)), constant_values=_POS_BIG)
        lab_row = jnp.pad(lab_row, ((0, 0), (0, col_pad)),
                          constant_values=jnp.iinfo(jnp.int32).min)

    b2d = fc_b.astype(jnp.float32).reshape(1, h)
    w = fc_w_t.astype(jnp.float32)

    grid = (n_rows // tm, n_cols // tn)
    kernel = functools.partial(_semantic_batch_hard_kernel,
                               tile_rows=tm, tile_cols=tn,
                               eps_total=float(h) * 1e-16)

    vmem_limit = int(min(max(_vmem_estimate(tm, tn, h, wv_dim) + (8 << 20),
                             16 << 20), 100 << 20))

    cost = pl.CostEstimate(
        flops=int(2 * n * n * h + 2 * n * wv_dim * h + 8 * n * n),
        transcendentals=int(4 * n),
        bytes_accessed=int(4 * (2 * n * h + n * wv_dim + n * h + 6 * n)))

    diff, sem = pl.pallas_call(
        kernel,
        out_shape=(
            jax.ShapeDtypeStruct((n_rows, 1), jnp.float32),   # diff
            jax.ShapeDtypeStruct((n_rows, h), jnp.float32),   # sem
        ),
        grid=grid,
        in_specs=[
            pl.BlockSpec((tm, h), lambda i, k: (i, 0)),        # x row tile
            pl.BlockSpec((tm, wv_dim), lambda i, k: (i, 0)),   # wv row tile
            pl.BlockSpec((wv_dim, h), lambda i, k: (0, 0)),    # fc weight (resident)
            pl.BlockSpec((1, h), lambda i, k: (0, 0)),         # fc bias (resident)
            pl.BlockSpec((tm, 1), lambda i, k: (i, 0)),        # alpha row tile
            pl.BlockSpec((h, tn), lambda i, k: (0, k)),        # -2 * x^T column tile
            pl.BlockSpec((1, tn), lambda i, k: (0, k)),        # ||x||^2 column tile
            pl.BlockSpec((tm, 1), lambda i, k: (i, 0)),        # labels (row side)
            pl.BlockSpec((1, tn), lambda i, k: (0, k)),        # labels (column side)
        ],
        out_specs=(
            pl.BlockSpec((tm, 1), lambda i, k: (i, 0)),
            pl.BlockSpec((tm, h), lambda i, k: (i, 0)),
        ),
        scratch_shapes=[
            pltpu.VMEM((tm, h), jnp.float32),    # sem tile (reused across column tiles)
            pltpu.VMEM((tm, 1), jnp.float32),    # ||sem||^2
            pltpu.VMEM((tm, 1), jnp.float32),    # running furthest-positive score
            pltpu.VMEM((tm, 1), jnp.float32),    # running closest-negative score
        ],
        compiler_params=pltpu.CompilerParams(
            dimension_semantics=("parallel", "arbitrary"),
            vmem_limit_bytes=vmem_limit,
        ),
        cost_estimate=cost,
    )(x_p, wv_p, w, b2d, alpha_p, xt, x_norm, lab_col, lab_row)

    return diff[:n, 0], sem[:n]


def _reference_forward(x, wv, label, fc_w_t, fc_b, alpha):
    """Pure-JAX replica of the torch forward (K==0 branch) for validation."""
    sem_org = jnp.dot(wv, fc_w_t, precision=lax.Precision.HIGHEST) + fc_b[None, :]
    sem = alpha * sem_org + (1.0 - alpha) * x
    diffs = sem[:, None, :] - x[None, :, :]
    dists = jnp.sqrt(jnp.sum(diffs * diffs + 1e-16, axis=-1))
    same = label[:, None] == label[None, :]
    eye = jnp.eye(label.shape[0], dtype=bool)
    pos = jnp.logical_xor(same, eye)
    fp = jnp.max(dists * pos.astype(jnp.float32), axis=1)
    cn = jnp.min(dists + 1e8 * same.astype(jnp.float32), axis=1)
    d = fp - cn
    return jnp.where(d > 20.0, d, jnp.log1p(jnp.exp(d))), sem


def _make_inputs(key, n, wv_size, num_hashing):
    k_x, k_wv, k_w, k_b, k_alpha = jax.random.split(key, 5)
    x = jax.random.normal(k_x, (n, num_hashing), dtype=jnp.float32)
    wv = jax.random.normal(k_wv, (n, wv_size), dtype=jnp.float32)
    label = jnp.arange(n, dtype=jnp.int32) // 2          # pairs -> every row has a positive
    # deterministic fc parameters (nn.Linear(wv_size, num_hashing)); stored as W^T
    bound = 1.0 / (wv_size ** 0.5)
    fc_w_t = jax.random.uniform(k_w, (wv_size, num_hashing),
                                minval=-bound, maxval=bound, dtype=jnp.float32)
    fc_b = jax.random.uniform(k_b, (num_hashing,),
                              minval=-bound, maxval=bound, dtype=jnp.float32)
    # alpha ~ U[0,1), shape (N, 1) — matches torch.rand(x.size(0), 1)
    alpha = jax.random.uniform(k_alpha, (n, 1), dtype=jnp.float32)
    return x, wv, label, fc_w_t, fc_b, alpha


if __name__ == "__main__":
    # small shapes consistent with the module: wv_size=16, num_hashing=32
    WV_SIZE, NUM_HASHING = 16, 32
    keys = jax.random.split(jax.random.PRNGKey(0), 3)
    # (batch, wrapper-kwargs): second case exercises row padding / multi-tile,
    # third case forces multiple column tiles (online max/min + column padding).
    cases = [(8, {}), (24, {}), (200, dict(max_tile_cols=128))]

    for case_key, (n, kw) in zip(keys, cases):
        x, wv, label, fc_w_t, fc_b, alpha = _make_inputs(case_key, n, WV_SIZE, NUM_HASHING)
        diff, sem = semantic_batch_hard_xbm_forward(x, wv, label, fc_w_t, fc_b, alpha, **kw)
        jax.block_until_ready((diff, sem))

        assert diff.shape == (n,) and sem.shape == (n, NUM_HASHING)

        diff_ref, sem_ref = _reference_forward(x, wv, label, fc_w_t, fc_b, alpha)
        assert bool(jnp.allclose(sem, sem_ref, rtol=1e-3, atol=1e-3)), f"sem mismatch n={n}"
        assert bool(jnp.allclose(diff, diff_ref, rtol=1e-3, atol=1e-3)), f"diff mismatch n={n}"

    print("KERNEL_OK")
</pallas_src>

<mosaic_0001>
module attributes {stable_mosaic.version = 11 : i64} {
  func.func @_semantic_batch_hard_kernel(%arg0: i32, %arg1: i32, %arg2: memref<8x32xf32, #tpu.memory_space<vmem>>, %arg3: memref<8x16xf32, #tpu.memory_space<vmem>>, %arg4: memref<16x32xf32, #tpu.memory_space<vmem>>, %arg5: memref<1x32xf32, #tpu.memory_space<vmem>>, %arg6: memref<8x1xf32, #tpu.memory_space<vmem>>, %arg7: memref<32x8xf32, #tpu.memory_space<vmem>>, %arg8: memref<1x8xf32, #tpu.memory_space<vmem>>, %arg9: memref<8x1xi32, #tpu.memory_space<vmem>>, %arg10: memref<1x8xi32, #tpu.memory_space<vmem>>, %arg11: memref<8x1xf32, #tpu.memory_space<vmem>>, %arg12: memref<8x32xf32, #tpu.memory_space<vmem>>, %arg13: memref<8x32xf32, #tpu.memory_space<vmem>>, %arg14: memref<8x1xf32, #tpu.memory_space<vmem>>, %arg15: memref<8x1xf32, #tpu.memory_space<vmem>>, %arg16: memref<8x1xf32, #tpu.memory_space<vmem>>) attributes {dimension_semantics = [#tpu.dimension_semantics<parallel>, #tpu.dimension_semantics<arbitrary>], iteration_bounds = array<i64: 1, 1>, scalar_prefetch = 0 : i64, scratch_operands = 4 : i64, tpu.core_type = #tpu.core_type<tc>, window_params = [{transform_indices = @transform_0, window_bounds = array<i64: 8, 32>}, {transform_indices = @transform_1, window_bounds = array<i64: 8, 16>}, {pipeline_mode = #tpu.pipeline_mode<synchronous>, transform_indices = @transform_2, window_bounds = array<i64: 16, 32>}, {pipeline_mode = #tpu.pipeline_mode<synchronous>, transform_indices = @transform_3, window_bounds = array<i64: 1, 32>}, {transform_indices = @transform_4, window_bounds = array<i64: 8, 1>}, {transform_indices = @transform_5, window_bounds = array<i64: 32, 8>}, {transform_indices = @transform_6, window_bounds = array<i64: 1, 8>}, {transform_indices = @transform_7, window_bounds = array<i64: 8, 1>}, {transform_indices = @transform_8, window_bounds = array<i64: 1, 8>}, {transform_indices = @transform_9, window_bounds = array<i64: 8, 1>}, {transform_indices = @transform_10, window_bounds = array<i64: 8, 32>}]} {
    %c0_i32 = arith.constant 0 : i32
    %0 = arith.cmpi eq, %arg1, %c0_i32 : i32
    %1 = arith.extui %0 : i1 to i32
    %c0_i32_0 = arith.constant 0 : i32
    %2 = arith.cmpi ne, %1, %c0_i32_0 : i32
    scf.if %2 {
      %c0_25 = arith.constant 0 : index
      %c0_26 = arith.constant 0 : index
      %41 = vector.load %arg2[%c0_25, %c0_26] : memref<8x32xf32, #tpu.memory_space<vmem>>, vector<8x32xf32>
      %c0_27 = arith.constant 0 : index
      %c0_28 = arith.constant 0 : index
      %42 = vector.load %arg6[%c0_27, %c0_28] : memref<8x1xf32, #tpu.memory_space<vmem>>, vector<8x1xf32>
      %c0_29 = arith.constant 0 : index
      %c0_30 = arith.constant 0 : index
      %43 = vector.load %arg3[%c0_29, %c0_30] : memref<8x16xf32, #tpu.memory_space<vmem>>, vector<8x16xf32>
      %c0_31 = arith.constant 0 : index
      %c0_32 = arith.constant 0 : index
      %44 = vector.load %arg4[%c0_31, %c0_32] : memref<16x32xf32, #tpu.memory_space<vmem>>, vector<16x32xf32>
      %cst_33 = arith.constant dense<0.000000e+00> : vector<8x32xf32>
      %45 = tpu.matmul %43, %44, %cst_33 {dimension_numbers = #tpu.dot_dimension_numbers<[1], [0], [0], [1], [0, 0, 1, 1], [], []>} : vector<8x16xf32>, vector<16x32xf32>, vector<8x32xf32> -> vector<8x32xf32>
      %c0_34 = arith.constant 0 : index
      %c0_35 = arith.constant 0 : index
      %46 = vector.load %arg5[%c0_34, %c0_35] : memref<1x32xf32, #tpu.memory_space<vmem>>, vector<1x32xf32>
      %47 = vector.broadcast %46 : vector<1x32xf32> to vector<8x32xf32>
      %48 = arith.addf %45, %47 : vector<8x32xf32>
      %49 = vector.broadcast %42 : vector<8x1xf32> to vector<8x32xf32>
      %50 = arith.mulf %49, %48 : vector<8x32xf32>
      %cst_36 = arith.constant 1.000000e+00 : f32
      %51 = vector.broadcast %cst_36 : f32 to vector<8x1xf32>
      %52 = arith.subf %51, %42 : vector<8x1xf32>
      %53 = vector.broadcast %52 : vector<8x1xf32> to vector<8x32xf32>
      %54 = arith.mulf %53, %41 : vector<8x32xf32>
      %55 = arith.addf %50, %54 : vector<8x32xf32>
      %c0_37 = arith.constant 0 : index
      %c0_38 = arith.constant 0 : index
      %56 = vector.load %arg13[%c0_37, %c0_38] : memref<8x32xf32, #tpu.memory_space<vmem>>, vector<8x32xf32>
      tpu.vector_store %arg13[%c0_37, %c0_38], %55 {strides = array<i32>} : memref<8x32xf32, #tpu.memory_space<vmem>>, vector<8x32xf32>,
      %c0_39 = arith.constant 0 : index
      %c0_40 = arith.constant 0 : index
      %57 = vector.load %arg12[%c0_39, %c0_40] : memref<8x32xf32, #tpu.memory_space<vmem>>, vector<8x32xf32>
      tpu.vector_store %arg12[%c0_39, %c0_40], %55 {strides = array<i32>} : memref<8x32xf32, #tpu.memory_space<vmem>>, vector<8x32xf32>,
      %58 = arith.mulf %55, %55 : vector<8x32xf32>
      %cst_41 = arith.constant dense<0.000000e+00> : vector<8xf32>
      %59 = vector.multi_reduction <add>, %58, %cst_41 [1] : vector<8x32xf32> to vector<8xf32>
      %60 = vector.shape_cast %59 : vector<8xf32> to vector<8x1xf32>
      %c0_42 = arith.constant 0 : index
      %c0_43 = arith.constant 0 : index
      %61 = vector.load %arg14[%c0_42, %c0_43] : memref<8x1xf32, #tpu.memory_space<vmem>>, vector<8x1xf32>
      tpu.vector_store %arg14[%c0_42, %c0_43], %60 {strides = array<i32>} : memref<8x1xf32, #tpu.memory_space<vmem>>, vector<8x1xf32>,
      %cst_44 = arith.constant -1.000000e+30 : f32
      %62 = vector.broadcast %cst_44 : f32 to vector<8x1xf32>
      %c0_45 = arith.constant 0 : index
      %c0_46 = arith.constant 0 : index
      %63 = vector.load %arg15[%c0_45, %c0_46] : memref<8x1xf32, #tpu.memory_space<vmem>>, vector<8x1xf32>
      tpu.vector_store %arg15[%c0_45, %c0_46], %62 {strides = array<i32>} : memref<8x1xf32, #tpu.memory_space<vmem>>, vector<8x1xf32>,
      %cst_47 = arith.constant 1.000000e+30 : f32
      %64 = vector.broadcast %cst_47 : f32 to vector<8x1xf32>
      %c0_48 = arith.constant 0 : index
      %c0_49 = arith.constant 0 : index
      %65 = vector.load %arg16[%c0_48, %c0_49] : memref<8x1xf32, #tpu.memory_space<vmem>>, vector<8x1xf32>
      tpu.vector_store %arg16[%c0_48, %c0_49], %64 {strides = array<i32>} : memref<8x1xf32, #tpu.memory_space<vmem>>, vector<8x1xf32>,
    } else {
    }
    %c0 = arith.constant 0 : index
    %c0_1 = arith.constant 0 : index
    %3 = vector.load %arg13[%c0, %c0_1] : memref<8x32xf32, #tpu.memory_space<vmem>>, vector<8x32xf32>
    %c0_2 = arith.constant 0 : index
    %c0_3 = arith.constant 0 : index
    %4 = vector.load %arg7[%c0_2, %c0_3] : memref<32x8xf32, #tpu.memory_space<vmem>>, vector<32x8xf32>
    %cst = arith.constant dense<0.000000e+00> : vector<8x8xf32>
    %5 = tpu.matmul %3, %4, %cst {dimension_numbers = #tpu.dot_dimension_numbers<[1], [0], [0], [1], [0, 0, 1, 1], [], []>} : vector<8x32xf32>, vector<32x8xf32>, vector<8x8xf32> -> vector<8x8xf32>
    %c0_4 = arith.constant 0 : index
    %c0_5 = arith.constant 0 : index
    %6 = vector.load %arg8[%c0_4, %c0_5] : memref<1x8xf32, #tpu.memory_space<vmem>>, vector<1x8xf32>
    %7 = vector.broadcast %6 : vector<1x8xf32> to vector<8x8xf32>
    %8 = arith.addf %5, %7 : vector<8x8xf32>
    %c0_6 = arith.constant 0 : index
    %c0_7 = arith.constant 0 : index
    %9 = vector.load %arg9[%c0_6, %c0_7] : memref<8x1xi32, #tpu.memory_space<vmem>>, vector<8x1xi32>
    %c0_8 = arith.constant 0 : index
    %c0_9 = arith.constant 0 : index
    %10 = vector.load %arg10[%c0_8, %c0_9] : memref<1x8xi32, #tpu.memory_space<vmem>>, vector<1x8xi32>
    %11 = vector.broadcast %9 : vector<8x1xi32> to vector<8x8xi32>
    %12 = vector.broadcast %10 : vector<1x8xi32> to vector<8x8xi32>
    %13 = arith.cmpi eq, %11, %12 : vector<8x8xi32>
    %c8_i32 = arith.constant 8 : i32
    %14 = arith.muli %arg0, %c8_i32 : i32
    %c8_i32_10 = arith.constant 8 : i32
    %15 = arith.muli %arg1, %c8_i32_10 : i32
    %16 = arith.subi %14, %15 : i32
    %17 = tpu.iota {dimensions = array<i32: 0>} : vector<8x1xi32>
    %18 = vector.broadcast %16 : i32 to vector<8x1xi32>
    %19 = arith.addi %17, %18 : vector<8x1xi32>
    %20 = tpu.iota {dimensions = array<i32: 1>} : vector<8x8xi32>
    %21 = vector.broadcast %19 : vector<8x1xi32> to vector<8x8xi32>
    %22 = arith.cmpi eq, %20, %21 : vector<8x8xi32>
    %23 = arith.xori %13, %22 : vector<8x8xi1>
    %c0_11 = arith.constant 0 : index
    %c0_12 = arith.constant 0 : index
    %24 = vector.load %arg15[%c0_11, %c0_12] : memref<8x1xf32, #tpu.memory_space<vmem>>, vector<8x1xf32>
    %cst_13 = arith.constant -1.000000e+30 : f32
    %25 = vector.broadcast %cst_13 : f32 to vector<8x8xf32>
    %26 = arith.select %23, %8, %25 : vector<8x8xi1>, vector<8x8xf32>
    %cst_14 = arith.constant dense<0xFF800000> : vector<8xf32>
    %27 = vector.multi_reduction <maximumf>, %26, %cst_14 [1] : vector<8x8xf32> to vector<8xf32>
    %28 = vector.shape_cast %27 : vector<8xf32> to vector<8x1xf32>
    %29 = arith.maximumf %24, %28 : vector<8x1xf32>
    %c0_15 = arith.constant 0 : index
    %c0_16 = arith.constant 0 : index
    %30 = vector.load %arg15[%c0_15, %c0_16] : memref<8x1xf32, #tpu.memory_space<vmem>>, vector<8x1xf32>
    tpu.vector_store %arg15[%c0_15, %c0_16], %29 {strides = array<i32>} : memref<8x1xf32, #tpu.memory_space<vmem>>, vector<8x1xf32>,
    %c0_17 = arith.constant 0 : index
    %c0_18 = arith.constant 0 : index
    %31 = vector.load %arg16[%c0_17, %c0_18] : memref<8x1xf32, #tpu.memory_space<vmem>>, vector<8x1xf32>
    %cst_19 = arith.constant 1.000000e+30 : f32
    %32 = vector.broadcast %cst_19 : f32 to vector<8x8xf32>
    %33 = arith.select %13, %32, %8 : vector<8x8xi1>, vector<8x8xf32>
    %cst_20 = arith.constant dense<0x7F800000> : vector<8xf32>
    %34 = vector.multi_reduction <minimumf>, %33, %cst_20 [1] : vector<8x8xf32> to vector<8xf32>
    %35 = vector.shape_cast %34 : vector<8xf32> to vector<8x1xf32>
    %36 = arith.minimumf %31, %35 : vector<8x1xf32>
    %c0_21 = arith.constant 0 : index
    %c0_22 = arith.constant 0 : index
    %37 = vector.load %arg16[%c0_21, %c0_22] : memref<8x1xf32, #tpu.memory_space<vmem>>, vector<8x1xf32>
    tpu.vector_store %arg16[%c0_21, %c0_22], %36 {strides = array<i32>} : memref<8x1xf32, #tpu.memory_space<vmem>>, vector<8x1xf32>,
    %c0_i32_23 = arith.constant 0 : i32
    %38 = arith.cmpi eq, %arg1, %c0_i32_23 : i32
    %39 = arith.extui %38 : i1 to i32
    %c0_i32_24 = arith.constant 0 : i32
    %40 = arith.cmpi ne, %39, %c0_i32_24 : i32
    scf.if %40 {
      %c0_25 = arith.constant 0 : index
      %c0_26 = arith.constant 0 : index
      %41 = vector.load %arg14[%c0_25, %c0_26] : memref<8x1xf32, #tpu.memory_space<vmem>>, vector<8x1xf32>
      %c0_27 = arith.constant 0 : index
      %c0_28 = arith.constant 0 : index
      %42 = vector.load %arg15[%c0_27, %c0_28] : memref<8x1xf32, #tpu.memory_space<vmem>>, vector<8x1xf32>
      %43 = arith.addf %41, %42 : vector<8x1xf32>
      %cst_29 = arith.constant 0.000000e+00 : f32
      %44 = vector.broadcast %cst_29 : f32 to vector<8x1xf32>
      %45 = arith.maximumf %43, %44 : vector<8x1xf32>
      %cst_30 = arith.constant 3.200000e-15 : f32
      %46 = vector.broadcast %cst_30 : f32 to vector<8x1xf32>
      %47 = arith.addf %45, %46 : vector<8x1xf32>
      %c0_31 = arith.constant 0 : index
      %c0_32 = arith.constant 0 : index
      %48 = vector.load %arg16[%c0_31, %c0_32] : memref<8x1xf32, #tpu.memory_space<vmem>>, vector<8x1xf32>
      %49 = arith.addf %41, %48 : vector<8x1xf32>
      %cst_33 = arith.constant 0.000000e+00 : f32
      %50 = vector.broadcast %cst_33 : f32 to vector<8x1xf32>
      %51 = arith.maximumf %49, %50 : vector<8x1xf32>
      %cst_34 = arith.constant 3.200000e-15 : f32
      %52 = vector.broadcast %cst_34 : f32 to vector<8x1xf32>
      %53 = arith.addf %51, %52 : vector<8x1xf32>
      %54 = math.sqrt %47 : vector<8x1xf32>
      %55 = math.sqrt %53 : vector<8x1xf32>
      %56 = arith.subf %54, %55 : vector<8x1xf32>
      %cst_35 = arith.constant 2.000000e+01 : f32
      %57 = vector.broadcast %cst_35 : f32 to vector<8x1xf32>
      %58 = arith.cmpf ogt, %56, %57 : vector<8x1xf32>
      %59 = math.exp %56 : vector<8x1xf32>
      %60 = math.log1p %59 : vector<8x1xf32>
      %61 = arith.select %58, %56, %60 : vector<8x1xi1>, vector<8x1xf32>
      %c0_36 = arith.constant 0 : index
      %c0_37 = arith.constant 0 : index
      %62 = vector.load %arg11[%c0_36, %c0_37] : memref<8x1xf32, #tpu.memory_space<vmem>>, vector<8x1xf32>
      tpu.vector_store %arg11[%c0_36, %c0_37], %61 {strides = array<i32>} : memref<8x1xf32, #tpu.memory_space<vmem>>, vector<8x1xf32>,
    } else {
    }
    return
  }
  func.func @transform_0(%arg0: i32, %arg1: i32) -> (i32, i32) {
    %c0_i32 = arith.constant 0 : i32
    %c0_i32_0 = arith.constant 0 : i32
    return %arg0, %c0_i32 : i32, i32
  }
  func.func @transform_1(%arg0: i32, %arg1: i32) -> (i32, i32) {
    %c0_i32 = arith.constant 0 : i32
    %c0_i32_0 = arith.constant 0 : i32
    return %arg0, %c0_i32 : i32, i32
  }
  func.func @transform_2(%arg0: i32, %arg1: i32) -> (i32, i32) {
    %c0_i32 = arith.constant 0 : i32
    %c0_i32_0 = arith.constant 0 : i32
    %c0_i32_1 = arith.constant 0 : i32
    return %c0_i32, %c0_i32_0 : i32, i32
  }
  func.func @transform_3(%arg0: i32, %arg1: i32) -> (i32, i32) {
    %c0_i32 = arith.constant 0 : i32
    %c0_i32_0 = arith.constant 0 : i32
    %c0_i32_1 = arith.constant 0 : i32
    return %c0_i32, %c0_i32_0 : i32, i32
  }
  func.func @transform_4(%arg0: i32, %arg1: i32) -> (i32, i32) {
    %c0_i32 = arith.constant 0 : i32
    %c0_i32_0 = arith.constant 0 : i32
    return %arg0, %c0_i32 : i32, i32
  }
  func.func @transform_5(%arg0: i32, %arg1: i32) -> (i32, i32) {
    %c0_i32 = arith.constant 0 : i32
    %c0_i32_0 = arith.constant 0 : i32
    return %c0_i32, %arg1 : i32, i32
  }
  func.func @transform_6(%arg0: i32, %arg1: i32) -> (i32, i32) {
    %c0_i32 = arith.constant 0 : i32
    %c0_i32_0 = arith.constant 0 : i32
    return %c0_i32, %arg1 : i32, i32
  }
  func.func @transform_7(%arg0: i32, %arg1: i32) -> (i32, i32) {
    %c0_i32 = arith.constant 0 : i32
    %c0_i32_0 = arith.constant 0 : i32
    return %arg0, %c0_i32 : i32, i32
  }
  func.func @transform_8(%arg0: i32, %arg1: i32) -> (i32, i32) {
    %c0_i32 = arith.constant 0 : i32
    %c0_i32_0 = arith.constant 0 : i32
    return %c0_i32, %arg1 : i32, i32
  }
  func.func @transform_9(%arg0: i32, %arg1: i32) -> (i32, i32) {
    %c0_i32 = arith.constant 0 : i32
    %c0_i32_0 = arith.constant 0 : i32
    return %arg0, %c0_i32 : i32, i32
  }
  func.func @transform_10(%arg0: i32, %arg1: i32) -> (i32, i32) {
    %c0_i32 = arith.constant 0 : i32
    %c0_i32_0 = arith.constant 0 : i32
    return %arg0, %c0_i32 : i32, i32
  }
}

</mosaic_0001>

<llo_original>
// kernel: tpu_custom_call.1
$region0: #{tpu_custom_call.1}
  #allocation0 [shape = 'u32[]', space=smem, size = 0x4, offset = 0x4, fixed_abs, tag = 'smem constant byte address 0x4 - core index']
  #allocation1 [shape = 'u32[72,128]{1,0:T(1,128)}', space=vmem, size = 0x9000, scoped, tag = 'internal scratch']
  #allocation2 [shape = 'f32[8,32]{1,0:T(8,128)}', space=vmem, size = 0x1000, scoped, tag = 'scratch operand']
  #allocation3 [shape = 'f32[8,1]{1,0:T(8,128)}', space=vmem, size = 0x1000, scoped, tag = 'scratch operand']
  #allocation4 [shape = 'f32[8,1]{1,0:T(8,128)}', space=vmem, size = 0x1000, scoped, tag = 'scratch operand']
  #allocation5 [shape = 'f32[8,1]{1,0:T(8,128)}', space=vmem, size = 0x1000, scoped, tag = 'scratch operand']
  %s0 = inlined_call_operand.vmem [shape: f32[8,32], index: 0, kind: input, shape index: {}]
  %s1 = inlined_call_operand.vmem [shape: f32[8,16], index: 1, kind: input, shape index: {}]
  %s2 = inlined_call_operand.vmem [shape: f32[16,32], index: 2, kind: input, shape index: {}]
  %s3 = inlined_call_operand.vmem [shape: f32[1,32], index: 3, kind: input, shape index: {}]
  %s4 = inlined_call_operand.vmem [shape: f32[8,1], index: 4, kind: input, shape index: {}]
  %s5 = inlined_call_operand.vmem [shape: f32[32,8], index: 5, kind: input, shape index: {}]
  %s6 = inlined_call_operand.vmem [shape: f32[1,8], index: 6, kind: input, shape index: {}]
  %s7 = inlined_call_operand.vmem [shape: s32[8,1], index: 7, kind: input, shape index: {}]
  %s8 = inlined_call_operand.vmem [shape: s32[1,8], index: 8, kind: input, shape index: {}]
  %s9 = inlined_call_operand.vmem [shape: f32[8,1], index: 9, kind: output, shape index: {0}]
  %s10 = inlined_call_operand.hbm [shape: f32[8,32], index: 10, kind: output, shape index: {1}]
  %11 = xla_tuple %s9, %s10
  %s12 = sld [smem:[#allocation0]]
  $region62: #{tpu_custom_call.1} parent=0
    _
  %s14 = ssub.s32 1, %s12
  %s15 = scalar_select 0, %s14, %s12
  $region1: #{tpu_custom_call.1} parent=0
    #allocation6 [shape = 'u8[4096]{0}', space=vmem, size = 0x1000, scoped, tag = 'output window, operand 1, single buffered']
    #allocation7 [shape = 's32[1]{0}', space=sflag, size = 0x4, scoped, tag = 'scoped memory for tpu_custom_call.1']
    %16 = vsyncpa [#allocation7], 0
    // Predicated region
    $region2: #{tpu_custom_call.1} parent=1 // pred_check
      _
    $region3: #{tpu_custom_call.1} parent=1 // pred_check_branch
      %18 = sbr.rel (0) target = $region5
    $region4: #{tpu_custom_call.1} parent=1 // pred_region
      _
    $region5: #{tpu_custom_call.1} parent=1 // pred_fallthru
      _
    // Predicated region
    $region6: #{tpu_custom_call.1} parent=1 // pred_check
      _
    $region7: #{tpu_custom_call.1} parent=1 // pred_check_branch
      %20 = sbr.rel (0) target = $region9
    $region8: #{tpu_custom_call.1} parent=1 // pred_region
      _
    $region9: #{tpu_custom_call.1} parent=1 // pred_fallthru
      _
    // Predicated region
    $region10: #{tpu_custom_call.1} parent=1 // pred_check
      _
    $region11: #{tpu_custom_call.1} parent=1 // pred_check_branch
      %22 = sbr.rel (0) target = $region13
    $region12: #{tpu_custom_call.1} parent=1 // pred_region
      _
    $region13: #{tpu_custom_call.1} parent=1 // pred_fallthru
      _
    // Predicated region
    $region14: #{tpu_custom_call.1} parent=1 // pred_check
      _
    $region15: #{tpu_custom_call.1} parent=1 // pred_check_branch
      %24 = sbr.rel (0) target = $region17
    $region16: #{tpu_custom_call.1} parent=1 // pred_region
      _
    $region17: #{tpu_custom_call.1} parent=1 // pred_fallthru
      _
    // Predicated region
    $region18: #{tpu_custom_call.1} parent=1 // pred_check
      _
    $region19: #{tpu_custom_call.1} parent=1 // pred_check_branch
      %26 = sbr.rel (0) target = $region21
    $region20: #{tpu_custom_call.1} parent=1 // pred_region
      _
    $region21: #{tpu_custom_call.1} parent=1 // pred_fallthru
      _
    // Predicated region
    $region22: #{tpu_custom_call.1} parent=1 // pred_check
      _
    $region23: #{tpu_custom_call.1} parent=1 // pred_check_branch
      %28 = sbr.rel (0) target = $region25
    $region24: #{tpu_custom_call.1} parent=1 // pred_region
      _
    $region25: #{tpu_custom_call.1} parent=1 // pred_fallthru
      _
    // Predicated region
    $region26: #{tpu_custom_call.1} parent=1 // pred_check
      _
    $region27: #{tpu_custom_call.1} parent=1 // pred_check_branch
      %30 = sbr.rel (0) target = $region29
    $region28: #{tpu_custom_call.1} parent=1 // pred_region
      _
    $region29: #{tpu_custom_call.1} parent=1 // pred_fallthru
      _
    // Predicated region
    $region30: #{tpu_custom_call.1} parent=1 // pred_check
      _
    $region31: #{tpu_custom_call.1} parent=1 // pred_check_branch
      %32 = sbr.rel (0) target = $region33
    $region32: #{tpu_custom_call.1} parent=1 // pred_region
      _
    $region33: #{tpu_custom_call.1} parent=1 // pred_fallthru
      _
    // Predicated region
    $region34: #{tpu_custom_call.1} parent=1 // pred_check
      _
    $region35: #{tpu_custom_call.1} parent=1 // pred_check_branch
      %34 = sbr.rel (0) target = $region37
    $region36: #{tpu_custom_call.1} parent=1 // pred_region
      _
    $region37: #{tpu_custom_call.1} parent=1 // pred_fallthru
      _
    %p35 = scmp.eq.s32.totalorder 0, 0
    // Predicated region
    $region38: #{tpu_custom_call.1} parent=1 // pred_check
      %p36 = pneg %p35
    $region39: #{tpu_custom_call.1} parent=1 // pred_check_branch
      %38 = sbr.rel (%p36) target = $region41
    $region40: #{tpu_custom_call.1} parent=1 // pred_region
      %v39 = vld [vmem:[%s0] sm:$0xff]
      %v40 = vld [vmem:[%s4] sm:$0xff]
      %v41 = vld [vmem:[%s1] sm:$0xff]
      %v42 = vld [vmem:[%s2] sm:$0xff]
      %v43 = vld [vmem:[%s2 + $0x8] sm:$0xff]
      %v44 = vld [vmem:[%s3] sm:$0x1]
      %v46 = vperm.slane %v44, 0
      %vm48 = vcmask 130048
      %v50 = vsel %vm48, %v41, 0
      %52 = vmatpush.msra.mxu0 0.0
      %53 = vmatpush.msra.mxu0 0.0
      %54 = vmatpush.msra.mxu0 0.0
      %55 = vmatpush.msra.mxu0 0.0
      %56 = vmatpush.msra.mxu0 0.0
      %57 = vmatpush.msra.mxu0 0.0
      %58 = vmatpush.msra.mxu0 0.0
      %59 = vmatpush.msra.mxu0 0.0
      %60 = vmatpush.msra.mxu0 0.0
      %61 = vmatpush.msra.mxu0 0.0
      %62 = vmatpush.msra.mxu0 0.0
      %63 = vmatpush.msra.mxu0 0.0
      %64 = vmatpush.msra.mxu0 0.0
      %65 = vmatpush.msra.mxu0 0.0
      %66 = vmatpush.msra.mxu0 %v43
      %67 = vmatpush.msra.mxu0 %v42
      %68 = vmatmul.f32.gmra.mxu0 %v50
      %v69 = vpop.f32.mrf.mxu0
      %v70 = vadd.f32 %v46, %v69
      %71 = vdwg.mxu0
      %73 = vset.pattern.permute.xlu0 0
      %74 = vperm.xlu0 %73, %v40
      %v75 = vpop.permute.xlu0 %74
      %v77 = vmul.f32 %v75, %v70
      %v78 = vsub.f32 1.0, %v40
      %80 = vset.pattern.permute.xlu0 0
      %81 = vperm.xlu0 %80, %v78
      %v82 = vpop.permute.xlu0 %81
      %v84 = vmul.f32 %v82, %v39
      %v85 = vadd.f32 %v77, %v84
      %vm86 = vcmask 261120
      %87 = vst.msk [vmem:[#allocation2] sm:$0xff] %vm86, %v85
      %88 = vst.msk [vmem:[#allocation6] sm:$0xff] %vm86, %v85
      %v89 = vmul.f32 %v85, %v85
      %v90 = vsel %vm86, %v89, 0.0
      %91 = vadd.xlane.f32.xlu0 %v90
      %v92 = vpop.xlane.xlu0 %91
      %vm93 = vcmask 7168
      %94 = vst.msk [vmem:[#allocation3] sm:$0xff] %vm93, %v92
      %95 = vst.msk [vmem:[#allocation4] sm:$0xff] %vm93, -1e+30
      %96 = vst.msk [vmem:[#allocation5] sm:$0xff] %vm93, 1e+30
    $region41: #{tpu_custom_call.1} parent=1 // pred_fallthru
      _
    %v97 = vld [vmem:[#allocation2] sm:$0xff]
    %v98 = vld [vmem:[%s5] sm:$0xff]
    %v99 = vld [vmem:[%s5 + $0x8] sm:$0xff]
    %v100 = vld [vmem:[%s5 + $0x10] sm:$0xff]
    %v101 = vld [vmem:[%s5 + $0x18] sm:$0xff]
    %v102 = vld [vmem:[%s6] sm:$0x1]
    %v104 = vperm.slane %v102, 0
    %vm106 = vcmask 261120
    %v108 = vsel %vm106, %v97, 0
    %110 = vmatpush.msra.mxu0 0.0
    %111 = vmatpush.msra.mxu0 0.0
    %112 = vmatpush.msra.mxu0 0.0
    %113 = vmatpush.msra.mxu0 0.0
    %114 = vmatpush.msra.mxu0 0.0
    %115 = vmatpush.msra.mxu0 0.0
    %116 = vmatpush.msra.mxu0 0.0
    %117 = vmatpush.msra.mxu0 0.0
    %118 = vmatpush.msra.mxu0 0.0
    %119 = vmatpush.msra.mxu0 0.0
    %120 = vmatpush.msra.mxu0 0.0
    %121 = vmatpush.msra.mxu0 0.0
    %122 = vmatpush.msra.mxu0 %v101
    %123 = vmatpush.msra.mxu0 %v100
    %124 = vmatpush.msra.mxu0 %v99
    %125 = vmatpush.msra.mxu0 %v98
    %126 = vmatmul.f32.gmra.mxu0 %v108
    %v127 = vpop.f32.mrf.mxu0
    %v128 = vadd.f32 %v104, %v127
    %129 = vdwg.mxu0
    %v130 = vld [vmem:[%s7] sm:$0xff]
    %v131 = vld [vmem:[%s8] sm:$0x1]
    %132 = vset.pattern.permute.xlu0 0
    %133 = vperm.xlu0 %132, %v130
    %v134 = vpop.permute.xlu0 %133
    %v135 = vperm.slane %v131, 0
    %vm136 = vcmp.eq.s32.totalorder %v134, %v135
    %s137 = smul.u32 0, 8
    %s138 = smul.u32 0, 8
    %s139 = ssub.s32 %s137, %s138
    %v140 = vlaneseq
    %v141 = vshrl.u32 %v140, 7
    %v142 = vstv %s139
    %v143 = vadd.s32 %v141, %v142
    %v144 = vlaneseq
    %v145 = vand.u32 %v144, 127
    %vm146 = vcmp.eq.s32.totalorder %v145, %v143
    %vm147 = vmxor %vm136, %vm146
    %v148 = vld [vmem:[#allocation4] sm:$0xff]
    %v149 = vsel %vm147, %v128, -1e+30
    %vm150 = vcmask 64512
    %v151 = vsel %vm150, %v149, -inf
    %152 = vmax.xlane.f32.xlu0 %v151
    %v153 = vpop.xlane.xlu0 %152
    %v154 = vmax.f32 %v148, %v153
    %vm155 = vcmask 7168
    %156 = vst.msk [vmem:[#allocation4] sm:$0xff] %vm155, %v154
    %v157 = vld [vmem:[#allocation5] sm:$0xff]
    %v158 = vsel %vm136, 1e+30, %v128
    %v159 = vsel %vm150, %v158, inf
    %160 = vmin.xlane.f32.xlu0 %v159
    %v161 = vpop.xlane.xlu0 %160
    %v162 = vmin.f32 %v157, %v161
    %163 = vst.msk [vmem:[#allocation5] sm:$0xff] %vm155, %v162
    // Predicated region
    $region42: #{tpu_custom_call.1} parent=1 // pred_check
      %p164 = pneg %p35
    $region43: #{tpu_custom_call.1} parent=1 // pred_check_branch
      %166 = sbr.rel (%p164) target = $region45
    $region44: #{tpu_custom_call.1} parent=1 // pred_region
      %v167 = vld [vmem:[#allocation3] sm:$0xff]
      %v168 = vld [vmem:[#allocation4] sm:$0xff]
      %v169 = vadd.f32 %v167, %v168
      %v170 = vmax.f32 %v169, 0.0
      %v171 = vadd.f32 %v170, 3.2e-15
      %v172 = vld [vmem:[#allocation5] sm:$0xff]
      %v173 = vadd.f32 %v167, %v172
      %v174 = vmax.f32 %v173, 0.0
      %v175 = vadd.f32 %v174, 3.2e-15
      %v176 = vrsqrt.pop %v171
      %v177 = vmul.f32 %v176, %v171
      %v178 = vmul.f32 %v177, %v176
      %v179 = vmul.f32 0.5, %v178
      %v180 = vsub.f32 1.5, %v179
      %v181 = vmul.f32 %v176, %v180
      %v182 = vmul.f32 %v171, %v181
      %vm183 = vcmp.eq.f32.partialorder %v171, inf
      %v184 = vsel %vm183, %v171, %v182
      %vm185 = vcmp.eq.f32.partialorder %v171, 0.0
      %v186 = vand.u32 %v171, 2147483648
      %v187 = vsel %vm185, %v186, %v184
      %v188 = vrsqrt.pop %v175
      %v189 = vmul.f32 %v188, %v175
      %v190 = vmul.f32 %v189, %v188
      %v191 = vmul.f32 0.5, %v190
      %v192 = vsub.f32 1.5, %v191
      %v193 = vmul.f32 %v188, %v192
      %v194 = vmul.f32 %v175, %v193
      %vm195 = vcmp.eq.f32.partialorder %v175, inf
      %v196 = vsel %vm195, %v175, %v194
      %vm197 = vcmp.eq.f32.partialorder %v175, 0.0
      %v198 = vand.u32 %v175, 2147483648
      %v199 = vsel %vm197, %v198, %v196
      %v200 = vsub.f32 %v187, %v199
      %vm201 = vcmp.gt.f32.partialorder %v200, 20.0
      %v202 = vmul.f32 %v200, 1.442695
      %v203 = vpow.pop %v202
      %v204 = vadd.f32 %v203, 1.0
      %v205 = vlog2.pop %v204
      %v206 = vmul.f32 %v205, 0.6931472
      %v207 = vmul.f32 -0.5, %v203
      %v208 = vadd.f32 %v207, 1.0
      %v209 = vmul.f32 %v208, %v203
      %v210 = vand.u32 2147483647, %v203
      %vm211 = vcmp.lt.f32.partialorder %v210, 0.0004427343
      %v212 = vsel %vm211, %v209, %v206
      %v213 = vsel %vm201, %v200, %v212
      %214 = vst.msk [vmem:[%s9] sm:$0xff] %vm155, %v213
    $region45: #{tpu_custom_call.1} parent=1 // pred_fallthru
      _
    // Predicated region
    $region46: #{tpu_custom_call.1} parent=1 // pred_check
      _
    $region47: #{tpu_custom_call.1} parent=1 // pred_check_branch
      %216 = sbr.rel (0) target = $region49
    $region48: #{tpu_custom_call.1} parent=1 // pred_region
      _
    $region49: #{tpu_custom_call.1} parent=1 // pred_fallthru
      _
    // Predicated region
    $region50: #{tpu_custom_call.1} parent=1 // pred_check
      _
    $region51: #{tpu_custom_call.1} parent=1 // pred_check_branch
      %218 = sbr.rel (0) target = $region53
    $region52: #{tpu_custom_call.1} parent=1 // pred_region
      %220 = vsyncadd [#allocation7], 0
      %s222 = sshll.u32 [#allocation6], 4
      %s223 = int_to_ptr.vmem [resolvable:$true] %s222
      %s224 = sshll.u32 %s10, 4
      %s225 = int_to_ptr.hbm [resolvable:$true] %s224
      %227 = dma.vmem_to_hbm [thread:$0]  %s223, 128, %s225, [#allocation7]
    $region53: #{tpu_custom_call.1} parent=1 // pred_fallthru
      _
    // Predicated region
    $region54: #{tpu_custom_call.1} parent=1 // pred_check
      _
    $region55: #{tpu_custom_call.1} parent=1 // pred_check_branch
      %229 = sbr.rel (0) target = $region57
    $region56: #{tpu_custom_call.1} parent=1 // pred_region
      _
    $region57: #{tpu_custom_call.1} parent=1 // pred_fallthru
      _
    // Predicated region
    $region58: #{tpu_custom_call.1} parent=1 // pred_check
      _
    $region59: #{tpu_custom_call.1} parent=1 // pred_check_branch
      %231 = sbr.rel (0) target = $region61
    $region60: #{tpu_custom_call.1} parent=1 // pred_region
      %233 = dma.done [#allocation7], 128
    $region61: #{tpu_custom_call.1} parent=1 // pred_fallthru
      _
    %234 = vsyncpa [#allocation7], 1

</llo_original>
